<compile_context>
chip_gen: v5e
topology: v5e:2x2
jax: 0.10.0
libtpu: 0.0.40
codegen_flags: <defaults>
</compile_context>

<pallas_src>
import functools

import jax
import jax.numpy as jnp
from jax.experimental import pallas as pl
from jax.experimental.pallas import tpu as pltpu


# ----------------------------- fused Pallas kernel ------------------------------


def _make_fused_head_kernel(n_layers):
    """Kernel signature: (x_ref, w0, b0, ..., w_{L-1}, b_{L-1}, o_ref).

    Hidden layers:  h = relu(h @ W'_i + b'_i)    (BN already folded into W'/b')
    Final layer:    o = l2_normalize(h @ W_L + b_L) along the feature axis.
    All intermediates live in VMEM/vregs; only the final result is stored.
    """

    def kernel(*refs):
        x_ref = refs[0]
        o_ref = refs[-1]
        param_refs = refs[1:-1]

        h = x_ref[...].astype(jnp.float32)
        for i in range(n_layers):
            w = param_refs[2 * i][...]        # bf16, resident in VMEM every grid step
            b = param_refs[2 * i + 1][...]    # f32
            # Feed the MXU bf16 (native on v5e/v6e/v7x); accumulate in f32.
            z = jnp.dot(h.astype(jnp.bfloat16), w,
                        preferred_element_type=jnp.float32) + b
            if i < n_layers - 1:
                # Linear + folded BatchNorm1d(eval) + ReLU; Dropout is identity in eval.
                h = jnp.maximum(z, 0.0)
            else:
                # F.normalize(p=2, dim=1): z / max(||z||, 1e-12)  (EUP rsqrt, no divide)
                sumsq = jnp.sum(z * z, axis=-1, keepdims=True)
                inv_norm = jax.lax.rsqrt(jnp.maximum(sumsq, 1e-24))
                o_ref[...] = (z * inv_norm).astype(o_ref.dtype)

    return kernel


# ------------------------------ host wrapper -------------------------------


def _round_down(v, m):
    return (v // m) * m


def _round_up(v, m):
    return ((v + m - 1) // m) * m


@functools.partial(jax.jit, static_argnames=("block_batch",))
def projection_head_forward(x, folded_params, block_batch=512):
    """Runs the fused projection head. folded_params = ((w0, b0), (w1, b1), ...)."""
    n, d_in = x.shape
    n_layers = len(folded_params)
    d_out = folded_params[-1][0].shape[1]

    # Batch tile selection:
    #  * multiple of 16 (bf16 sublane packing) when possible, else 8, else the full
    #    batch dim (legal: block == full array dim),
    #  * capped so there are >= 2 tiles when n is large enough, so the "parallel"
    #    batch axis can shard across both TensorCores on v7x.
    tb = min(block_batch, n)
    if n >= 32:
        tb = min(tb, _round_up(pl.cdiv(n, 2), 16))
    if tb >= 16:
        tb = _round_down(tb, 16)
    elif tb >= 8:
        tb = _round_down(tb, 8)
    num_tiles = pl.cdiv(n, tb)
    # No host-side padding: Pallas masks the ragged last output tile; out-of-bounds
    # input rows only feed output rows that are write-masked / never read back.

    in_specs = [pl.BlockSpec((tb, d_in), lambda i: (i, 0))]
    flat_args = [x]
    flops = 0
    bytes_accessed = x.size * x.dtype.itemsize + n * d_out * x.dtype.itemsize
    for w, b in folded_params:
        # Weights / biases: full blocks with a constant index_map -> resident in VMEM,
        # fetched once (Pallas skips re-DMA when the block index does not change).
        in_specs.append(pl.BlockSpec(w.shape, lambda i: (0, 0)))
        in_specs.append(pl.BlockSpec(b.shape, lambda i: (0, 0)))
        flat_args.append(w)
        flat_args.append(b)
        flops += 2 * n * w.shape[0] * w.shape[1]
        bytes_accessed += w.size * w.dtype.itemsize + b.size * b.dtype.itemsize

    out = pl.pallas_call(
        _make_fused_head_kernel(n_layers),
        out_shape=jax.ShapeDtypeStruct((n, d_out), x.dtype),
        grid=(num_tiles,),
        in_specs=in_specs,
        out_specs=pl.BlockSpec((tb, d_out), lambda i: (i, 0)),
        compiler_params=pltpu.CompilerParams(
            dimension_semantics=("parallel",),  # independent batch tiles (v7x: 2 TCs)
        ),
        cost_estimate=pl.CostEstimate(
            flops=flops, transcendentals=n, bytes_accessed=bytes_accessed),
    )(*flat_args)
    return out


# ---------------------------- parameter creation ----------------------------


def init_projection_head_params(key, in_features, hidden_features):
    """Deterministic synthetic parameters matching ProjectionHead.__init__ shapes.

    Weights are stored transposed as (in, out) so the kernel computes x @ W + b.
    Non-final layers carry BatchNorm1d (eval) parameters / running stats.
    """
    raw = []
    cur = in_features
    for i, h_dim in enumerate(hidden_features):
        key, kw, kb, kg, kbe, km, kv = jax.random.split(key, 7)
        bound = 1.0 / float(cur) ** 0.5
        w = jax.random.uniform(kw, (cur, h_dim), jnp.float32, -bound, bound)  # (in,out)=W^T
        b = jax.random.uniform(kb, (1, h_dim), jnp.float32, -bound, bound)
        layer = {"w": w, "b": b}
        if i < len(hidden_features) - 1:
            layer["gamma"] = 1.0 + 0.1 * jax.random.normal(kg, (1, h_dim), jnp.float32)
            layer["beta"] = 0.1 * jax.random.normal(kbe, (1, h_dim), jnp.float32)
            layer["running_mean"] = 0.05 * jax.random.normal(km, (1, h_dim), jnp.float32)
            layer["running_var"] = 1.0 + 0.1 * jax.random.uniform(kv, (1, h_dim), jnp.float32)
            layer["eps"] = 1e-5
        raw.append(layer)
        cur = h_dim
    return raw


def fold_bn_into_linear(raw_params, weight_dtype=jnp.bfloat16):
    """One-time fold of eval-mode BatchNorm1d into the preceding Linear.

    Folding is done in f32; weights are then cast once to bf16 for the MXU.
    Biases stay f32 (the whole elementwise chain in the kernel is f32).
    """
    folded = []
    for layer in raw_params:
        w, b = layer["w"], layer["b"]
        if "gamma" in layer:
            scale = layer["gamma"] / jnp.sqrt(layer["running_var"] + layer["eps"])  # (1,H)
            shift = layer["beta"] - layer["running_mean"] * scale
            w = w * scale          # scale each output column
            b = b * scale + shift
        folded.append((w.astype(weight_dtype), b.astype(jnp.float32)))
    return tuple(folded)


# ------------------------------ pure-JAX references ------------------------------


def projection_head_reference(x, raw_params):
    """Pure-JAX f32 reference reproducing the PyTorch eval-mode forward (un-folded BN)."""
    h = x
    n_layers = len(raw_params)
    for i, layer in enumerate(raw_params):
        z = h @ layer["w"] + layer["b"]
        if i < n_layers - 1:
            z = (z - layer["running_mean"]) / jnp.sqrt(layer["running_var"] + layer["eps"])
            z = z * layer["gamma"] + layer["beta"]
            h = jnp.maximum(z, 0.0)
            # Dropout: identity in eval mode.
        else:
            norm = jnp.sqrt(jnp.sum(z * z, axis=1, keepdims=True))
            h = z / jnp.maximum(norm, 1e-12)
    return h


def fused_reference(x, folded_params):
    """Reference that mirrors the kernel exactly (folded BN, bf16 MXU inputs, f32 acc)."""
    h = x.astype(jnp.float32)
    n_layers = len(folded_params)
    for i, (w, b) in enumerate(folded_params):
        z = jnp.dot(h.astype(w.dtype), w, preferred_element_type=jnp.float32) + b
        if i < n_layers - 1:
            h = jnp.maximum(z, 0.0)
        else:
            sumsq = jnp.sum(z * z, axis=-1, keepdims=True)
            h = z * jax.lax.rsqrt(jnp.maximum(sumsq, 1e-24))
    return h


# ----------------------------------- main -----------------------------------

if __name__ == "__main__":
    # Small shapes consistent with the module: batch=8, in_features=32,
    # hidden_features=[64, 128, 256].
    batch = 8
    in_features = 32
    hidden_features = [64, 128, 256]

    key = jax.random.PRNGKey(0)
    key, kx, kp = jax.random.split(key, 3)
    x = jax.random.normal(kx, (batch, in_features), jnp.float32)

    raw_params = init_projection_head_params(kp, in_features, hidden_features)
    folded_params = fold_bn_into_linear(raw_params)

    out = jax.block_until_ready(projection_head_forward(x, folded_params))
    assert out.shape == (batch, hidden_features[-1]), out.shape

    # Exact functional check against a reference mirroring the kernel's bf16 MXU feed.
    fref = fused_reference(x, folded_params)
    assert jnp.allclose(out, fref, atol=1e-4, rtol=1e-4), float(jnp.max(jnp.abs(out - fref)))

    # Module-semantics check (PyTorch eval forward in f32) within bf16 weight precision.
    ref = projection_head_reference(x, raw_params)
    assert jnp.allclose(out, ref, atol=2e-2, rtol=2e-2), float(jnp.max(jnp.abs(out - ref)))

    # Rows are unit-norm after F.normalize semantics.
    assert jnp.allclose(jnp.linalg.norm(out, axis=1), 1.0, atol=1e-3)

    # Ragged-batch check: batch not a multiple of the tile -> masked last-tile store.
    xr = jax.random.normal(key, (13, in_features), jnp.float32)
    out_r = jax.block_until_ready(projection_head_forward(xr, folded_params))
    fref_r = fused_reference(xr, folded_params)
    assert out_r.shape == (13, hidden_features[-1]), out_r.shape
    assert jnp.allclose(out_r, fref_r, atol=1e-4, rtol=1e-4), float(jnp.max(jnp.abs(out_r - fref_r)))

    print("KERNEL_OK")
</pallas_src>

<mosaic_0001>
module attributes {stable_mosaic.version = 11 : i64} {
  func.func @kernel(%arg0: i32, %arg1: memref<8x32xf32, #tpu.memory_space<vmem>>, %arg2: memref<32x64xbf16, #tpu.memory_space<vmem>>, %arg3: memref<1x64xf32, #tpu.memory_space<vmem>>, %arg4: memref<64x128xbf16, #tpu.memory_space<vmem>>, %arg5: memref<1x128xf32, #tpu.memory_space<vmem>>, %arg6: memref<128x256xbf16, #tpu.memory_space<vmem>>, %arg7: memref<1x256xf32, #tpu.memory_space<vmem>>, %arg8: memref<8x256xf32, #tpu.memory_space<vmem>>) attributes {dimension_semantics = [#tpu.dimension_semantics<parallel>], iteration_bounds = array<i64: 1>, scalar_prefetch = 0 : i64, scratch_operands = 0 : i64, tpu.core_type = #tpu.core_type<tc>, window_params = [{transform_indices = @transform_0, window_bounds = array<i64: 8, 32>}, {pipeline_mode = #tpu.pipeline_mode<synchronous>, transform_indices = @transform_1, window_bounds = array<i64: 32, 64>}, {pipeline_mode = #tpu.pipeline_mode<synchronous>, transform_indices = @transform_2, window_bounds = array<i64: 1, 64>}, {pipeline_mode = #tpu.pipeline_mode<synchronous>, transform_indices = @transform_3, window_bounds = array<i64: 64, 128>}, {pipeline_mode = #tpu.pipeline_mode<synchronous>, transform_indices = @transform_4, window_bounds = array<i64: 1, 128>}, {pipeline_mode = #tpu.pipeline_mode<synchronous>, transform_indices = @transform_5, window_bounds = array<i64: 128, 256>}, {pipeline_mode = #tpu.pipeline_mode<synchronous>, transform_indices = @transform_6, window_bounds = array<i64: 1, 256>}, {transform_indices = @transform_7, window_bounds = array<i64: 8, 256>}]} {
    %c0 = arith.constant 0 : index
    %c0_0 = arith.constant 0 : index
    %0 = vector.load %arg1[%c0, %c0_0] : memref<8x32xf32, #tpu.memory_space<vmem>>, vector<8x32xf32>
    %c0_1 = arith.constant 0 : index
    %c0_2 = arith.constant 0 : index
    %1 = vector.load %arg2[%c0_1, %c0_2] : memref<32x64xbf16, #tpu.memory_space<vmem>>, vector<32x64xbf16>
    %c0_3 = arith.constant 0 : index
    %c0_4 = arith.constant 0 : index
    %2 = vector.load %arg3[%c0_3, %c0_4] : memref<1x64xf32, #tpu.memory_space<vmem>>, vector<1x64xf32>
    %3 = arith.truncf %0 : vector<8x32xf32> to vector<8x32xbf16>
    %cst = arith.constant dense<0.000000e+00> : vector<8x64xf32>
    %4 = tpu.matmul %3, %1, %cst {dimension_numbers = #tpu.dot_dimension_numbers<[1], [0], [0], [1], [0, 0, 1, 1], [], []>} : vector<8x32xbf16>, vector<32x64xbf16>, vector<8x64xf32> -> vector<8x64xf32>
    %5 = vector.broadcast %2 : vector<1x64xf32> to vector<8x64xf32>
    %6 = arith.addf %4, %5 : vector<8x64xf32>
    %cst_5 = arith.constant 0.000000e+00 : f32
    %7 = vector.broadcast %cst_5 : f32 to vector<8x64xf32>
    %8 = arith.maximumf %6, %7 : vector<8x64xf32>
    %c0_6 = arith.constant 0 : index
    %c0_7 = arith.constant 0 : index
    %9 = vector.load %arg4[%c0_6, %c0_7] : memref<64x128xbf16, #tpu.memory_space<vmem>>, vector<64x128xbf16>
    %c0_8 = arith.constant 0 : index
    %c0_9 = arith.constant 0 : index
    %10 = vector.load %arg5[%c0_8, %c0_9] : memref<1x128xf32, #tpu.memory_space<vmem>>, vector<1x128xf32>
    %11 = arith.truncf %8 : vector<8x64xf32> to vector<8x64xbf16>
    %cst_10 = arith.constant dense<0.000000e+00> : vector<8x128xf32>
    %12 = tpu.matmul %11, %9, %cst_10 {dimension_numbers = #tpu.dot_dimension_numbers<[1], [0], [0], [1], [0, 0, 1, 1], [], []>} : vector<8x64xbf16>, vector<64x128xbf16>, vector<8x128xf32> -> vector<8x128xf32>
    %13 = vector.broadcast %10 : vector<1x128xf32> to vector<8x128xf32>
    %14 = arith.addf %12, %13 : vector<8x128xf32>
    %cst_11 = arith.constant 0.000000e+00 : f32
    %15 = vector.broadcast %cst_11 : f32 to vector<8x128xf32>
    %16 = arith.maximumf %14, %15 : vector<8x128xf32>
    %c0_12 = arith.constant 0 : index
    %c0_13 = arith.constant 0 : index
    %17 = vector.load %arg6[%c0_12, %c0_13] : memref<128x256xbf16, #tpu.memory_space<vmem>>, vector<128x256xbf16>
    %c0_14 = arith.constant 0 : index
    %c0_15 = arith.constant 0 : index
    %18 = vector.load %arg7[%c0_14, %c0_15] : memref<1x256xf32, #tpu.memory_space<vmem>>, vector<1x256xf32>
    %19 = arith.truncf %16 : vector<8x128xf32> to vector<8x128xbf16>
    %cst_16 = arith.constant dense<0.000000e+00> : vector<8x256xf32>
    %20 = tpu.matmul %19, %17, %cst_16 {dimension_numbers = #tpu.dot_dimension_numbers<[1], [0], [0], [1], [0, 0, 1, 1], [], []>} : vector<8x128xbf16>, vector<128x256xbf16>, vector<8x256xf32> -> vector<8x256xf32>
    %21 = vector.broadcast %18 : vector<1x256xf32> to vector<8x256xf32>
    %22 = arith.addf %20, %21 : vector<8x256xf32>
    %23 = arith.mulf %22, %22 : vector<8x256xf32>
    %cst_17 = arith.constant dense<0.000000e+00> : vector<8xf32>
    %24 = vector.multi_reduction <add>, %23, %cst_17 [1] : vector<8x256xf32> to vector<8xf32>
    %25 = vector.shape_cast %24 : vector<8xf32> to vector<8x1xf32>
    %cst_18 = arith.constant 1.000000e-24 : f32
    %26 = vector.broadcast %cst_18 : f32 to vector<8x1xf32>
    %27 = arith.maximumf %25, %26 : vector<8x1xf32>
    %28 = math.rsqrt %27 : vector<8x1xf32>
    %29 = vector.broadcast %28 : vector<8x1xf32> to vector<8x256xf32>
    %30 = arith.mulf %22, %29 : vector<8x256xf32>
    %c0_19 = arith.constant 0 : index
    %c0_20 = arith.constant 0 : index
    %31 = vector.load %arg8[%c0_19, %c0_20] : memref<8x256xf32, #tpu.memory_space<vmem>>, vector<8x256xf32>
    tpu.vector_store %arg8[%c0_19, %c0_20], %30 {strides = array<i32>} : memref<8x256xf32, #tpu.memory_space<vmem>>, vector<8x256xf32>,
    return
  }
  func.func @transform_0(%arg0: i32) -> (i32, i32) {
    %c0_i32 = arith.constant 0 : i32
    %c0_i32_0 = arith.constant 0 : i32
    return %arg0, %c0_i32 : i32, i32
  }
  func.func @transform_1(%arg0: i32) -> (i32, i32) {
    %c0_i32 = arith.constant 0 : i32
    %c0_i32_0 = arith.constant 0 : i32
    %c0_i32_1 = arith.constant 0 : i32
    return %c0_i32, %c0_i32_0 : i32, i32
  }
  func.func @transform_2(%arg0: i32) -> (i32, i32) {
    %c0_i32 = arith.constant 0 : i32
    %c0_i32_0 = arith.constant 0 : i32
    %c0_i32_1 = arith.constant 0 : i32
    return %c0_i32, %c0_i32_0 : i32, i32
  }
  func.func @transform_3(%arg0: i32) -> (i32, i32) {
    %c0_i32 = arith.constant 0 : i32
    %c0_i32_0 = arith.constant 0 : i32
    %c0_i32_1 = arith.constant 0 : i32
    return %c0_i32, %c0_i32_0 : i32, i32
  }
  func.func @transform_4(%arg0: i32) -> (i32, i32) {
    %c0_i32 = arith.constant 0 : i32
    %c0_i32_0 = arith.constant 0 : i32
    %c0_i32_1 = arith.constant 0 : i32
    return %c0_i32, %c0_i32_0 : i32, i32
  }
  func.func @transform_5(%arg0: i32) -> (i32, i32) {
    %c0_i32 = arith.constant 0 : i32
    %c0_i32_0 = arith.constant 0 : i32
    %c0_i32_1 = arith.constant 0 : i32
    return %c0_i32, %c0_i32_0 : i32, i32
  }
  func.func @transform_6(%arg0: i32) -> (i32, i32) {
    %c0_i32 = arith.constant 0 : i32
    %c0_i32_0 = arith.constant 0 : i32
    %c0_i32_1 = arith.constant 0 : i32
    return %c0_i32, %c0_i32_0 : i32, i32
  }
  func.func @transform_7(%arg0: i32) -> (i32, i32) {
    %c0_i32 = arith.constant 0 : i32
    %c0_i32_0 = arith.constant 0 : i32
    return %arg0, %c0_i32 : i32, i32
  }
}

</mosaic_0001>

<llo_original>
// kernel: projection_head_forward.1
$region0: #{projection_head_forward.1}
  #allocation0 [shape = 'u32[]', space=smem, size = 0x4, offset = 0x4, fixed_abs, tag = 'smem constant byte address 0x4 - core index']
  #allocation1 [shape = 'u32[72,128]{1,0:T(1,128)}', space=vmem, size = 0x9000, scoped, tag = 'internal scratch']
  %s0 = inlined_call_operand.hbm [shape: f32[8,32], index: 0, kind: input, shape index: {}]
  %s1 = inlined_call_operand.hbm [shape: bf16[32,64], index: 1, kind: input, shape index: {}]
  %s2 = inlined_call_operand.vmem [shape: f32[1,64], index: 2, kind: input, shape index: {}]
  %s3 = inlined_call_operand.hbm [shape: bf16[64,128], index: 3, kind: input, shape index: {}]
  %s4 = inlined_call_operand.hbm [shape: f32[1,128], index: 4, kind: input, shape index: {}]
  %s5 = inlined_call_operand.hbm [shape: bf16[128,256], index: 5, kind: input, shape index: {}]
  %s6 = inlined_call_operand.vmem [shape: f32[1,256], index: 6, kind: input, shape index: {}]
  %s7 = inlined_call_operand.hbm [shape: f32[8,256], index: 7, kind: output, shape index: {}]
  %s8 = sld [smem:[#allocation0]]
  $region58: #{projection_head_forward.1} parent=0
    _
  %s10 = ssub.s32 1, %s8
  %s11 = scalar_select 0, %s10, %s8
  $region1: #{projection_head_forward.1} parent=0
    #allocation2 [shape = 'u8[4096]{0}', space=vmem, size = 0x1000, scoped, tag = 'input window, operand 0, single buffered']
    #allocation3 [shape = 's32[1]{0}', space=sflag, size = 0x4, scoped, tag = 'scoped memory for projection_head_forward.1']
    #allocation4 [shape = 's32[1]{0}', space=sflag, size = 0x4, scoped, tag = 'scoped memory for projection_head_forward.1']
    #allocation5 [shape = 'u8[8192]{0}', space=vmem, size = 0x2000, scoped, tag = 'input window, operand 1, single buffered']
    #allocation6 [shape = 's32[1]{0}', space=sflag, size = 0x4, scoped, tag = 'scoped memory for projection_head_forward.1']
    #allocation7 [shape = 'u8[16384]{0}', space=vmem, size = 0x4000, scoped, tag = 'input window, operand 3, single buffered']
    #allocation8 [shape = 'u8[512]{0}', space=vmem, size = 0x400, scoped, tag = 'input window, operand 4, single buffered']
    #allocation9 [shape = 's32[1]{0}', space=sflag, size = 0x4, scoped, tag = 'scoped memory for projection_head_forward.1']
    #allocation10 [shape = 'u8[65536]{0}', space=vmem, size = 0x10000, scoped, tag = 'input window, operand 5, single buffered']
    #allocation11 [shape = 'u8[8192]{0}', space=vmem, size = 0x2000, scoped, tag = 'output window, operand 0, single buffered']
    %12 = vsyncpa [#allocation3], 0
    %13 = vsyncpa [#allocation6], 0
    %14 = vsyncpa [#allocation9], 0
    %15 = vsyncpa [#allocation4], 0
    // Predicated region
    $region2: #{projection_head_forward.1} parent=1 // pred_check
      _
    $region3: #{projection_head_forward.1} parent=1 // pred_check_branch
      %17 = sbr.rel (0) target = $region5
    $region4: #{projection_head_forward.1} parent=1 // pred_region
      %19 = vsyncadd [#allocation3], 0
      %s21 = sshll.u32 %s0, 4
      %s22 = int_to_ptr.hbm [resolvable:$true] %s21
      %s23 = sshll.u32 [#allocation2], 4
      %s24 = int_to_ptr.vmem [resolvable:$true] %s23
      %26 = dma.hbm_to_vmem [thread:$0]  %s22, 128, %s24, [#allocation3]
    $region5: #{projection_head_forward.1} parent=1 // pred_fallthru
      _
    // Predicated region
    $region6: #{projection_head_forward.1} parent=1 // pred_check
      _
    $region7: #{projection_head_forward.1} parent=1 // pred_check_branch
      %28 = sbr.rel (0) target = $region9
    $region8: #{projection_head_forward.1} parent=1 // pred_region
      %30 = vsyncadd [#allocation6], 0
      %s31 = sshll.u32 %s1, 4
      %s32 = int_to_ptr.hbm [resolvable:$true] %s31
      %s33 = sshll.u32 [#allocation5], 4
      %s34 = int_to_ptr.vmem [resolvable:$true] %s33
      %39 = dma.hbm_to_vmem [thread:$0]  %s32, 256, %s34, [#allocation6], 64, 64, 4
    $region9: #{projection_head_forward.1} parent=1 // pred_fallthru
      _
    // Predicated region
    $region10: #{projection_head_forward.1} parent=1 // pred_check
      _
    $region11: #{projection_head_forward.1} parent=1 // pred_check_branch
      %41 = sbr.rel (0) target = $region13
    $region12: #{projection_head_forward.1} parent=1 // pred_region
      _
    $region13: #{projection_head_forward.1} parent=1 // pred_fallthru
      _
    // Predicated region
    $region14: #{projection_head_forward.1} parent=1 // pred_check
      _
    $region15: #{projection_head_forward.1} parent=1 // pred_check_branch
      %43 = sbr.rel (0) target = $region17
    $region16: #{projection_head_forward.1} parent=1 // pred_region
      %45 = vsyncadd [#allocation6], 0
      %s46 = sshll.u32 %s3, 4
      %s47 = int_to_ptr.hbm [resolvable:$true] %s46
      %s48 = sshll.u32 [#allocation7], 4
      %s49 = int_to_ptr.vmem [resolvable:$true] %s48
      %54 = dma.hbm_to_vmem [thread:$0]  %s47, 512, %s49, [#allocation6], 64, 64, 4
    $region17: #{projection_head_forward.1} parent=1 // pred_fallthru
      _
    // Predicated region
    $region18: #{projection_head_forward.1} parent=1 // pred_check
      _
    $region19: #{projection_head_forward.1} parent=1 // pred_check_branch
      %56 = sbr.rel (0) target = $region21
    $region20: #{projection_head_forward.1} parent=1 // pred_region
      %58 = vsyncadd [#allocation9], 0
      %s60 = sshll.u32 %s4, 4
      %s61 = int_to_ptr.hbm [resolvable:$true] %s60
      %s62 = sshll.u32 [#allocation8], 4
      %s63 = int_to_ptr.vmem [resolvable:$true] %s62
      %65 = dma.hbm_to_vmem [thread:$0]  %s61, 16, %s63, [#allocation9]
    $region21: #{projection_head_forward.1} parent=1 // pred_fallthru
      _
    // Predicated region
    $region22: #{projection_head_forward.1} parent=1 // pred_check
      _
    $region23: #{projection_head_forward.1} parent=1 // pred_check_branch
      %67 = sbr.rel (0) target = $region25
    $region24: #{projection_head_forward.1} parent=1 // pred_region
      %69 = vsyncadd [#allocation9], 0
      %s70 = sshll.u32 %s5, 4
      %s71 = int_to_ptr.hbm [resolvable:$true] %s70
      %s72 = sshll.u32 [#allocation10], 4
      %s73 = int_to_ptr.vmem [resolvable:$true] %s72
      %78 = dma.hbm_to_vmem [thread:$0]  %s71, 2048, %s73, [#allocation9], 128, 128, 8
    $region25: #{projection_head_forward.1} parent=1 // pred_fallthru
      _
    // Predicated region
    $region26: #{projection_head_forward.1} parent=1 // pred_check
      _
    $region27: #{projection_head_forward.1} parent=1 // pred_check_branch
      %80 = sbr.rel (0) target = $region29
    $region28: #{projection_head_forward.1} parent=1 // pred_region
      _
    $region29: #{projection_head_forward.1} parent=1 // pred_fallthru
      _
    // Predicated region
    $region30: #{projection_head_forward.1} parent=1 // pred_check
      _
    $region31: #{projection_head_forward.1} parent=1 // pred_check_branch
      %82 = sbr.rel (0) target = $region33
    $region32: #{projection_head_forward.1} parent=1 // pred_region
      %84 = dma.done [#allocation3], 128
    $region33: #{projection_head_forward.1} parent=1 // pred_fallthru
      _
    // Predicated region
    $region34: #{projection_head_forward.1} parent=1 // pred_check
      _
    $region35: #{projection_head_forward.1} parent=1 // pred_check_branch
      %86 = sbr.rel (0) target = $region37
    $region36: #{projection_head_forward.1} parent=1 // pred_region
      %88 = dma.done [#allocation6], 256
    $region37: #{projection_head_forward.1} parent=1 // pred_fallthru
      _
    // Predicated region
    $region38: #{projection_head_forward.1} parent=1 // pred_check
      _
    $region39: #{projection_head_forward.1} parent=1 // pred_check_branch
      %90 = sbr.rel (0) target = $region41
    $region40: #{projection_head_forward.1} parent=1 // pred_region
      %92 = dma.done [#allocation6], 512
    $region41: #{projection_head_forward.1} parent=1 // pred_fallthru
      _
    // Predicated region
    $region42: #{projection_head_forward.1} parent=1 // pred_check
      _
    $region43: #{projection_head_forward.1} parent=1 // pred_check_branch
      %94 = sbr.rel (0) target = $region45
    $region44: #{projection_head_forward.1} parent=1 // pred_region
      %96 = dma.done [#allocation9], 16
    $region45: #{projection_head_forward.1} parent=1 // pred_fallthru
      _
    // Predicated region
    $region46: #{projection_head_forward.1} parent=1 // pred_check
      _
    $region47: #{projection_head_forward.1} parent=1 // pred_check_branch
      %98 = sbr.rel (0) target = $region49
    $region48: #{projection_head_forward.1} parent=1 // pred_region
      %100 = dma.done [#allocation9], 2048
    $region49: #{projection_head_forward.1} parent=1 // pred_fallthru
      _
    %v102 = vld [vmem:[#allocation2] sm:$0xff]
    %v103 = vld [vmem:[#allocation5] sm:$0xf]
    %v104 = vld [vmem:[#allocation5 + $0x4] sm:$0xf]
    %v105 = vld [vmem:[#allocation5 + $0x8] sm:$0xf]
    %v106 = vld [vmem:[#allocation5 + $0xc] sm:$0xf]
    %v107 = vld [vmem:[%s2] sm:$0x1]
    %v108 = vpack.c.bf16 %v102, %v102
    %v110 = vperm.slane %v107, 0
    %v116 = vunpack.c.l.b16 %v103
    %v117 = vunpack.c.l.b16 %v104
    %v118 = vunpack.c.l.b16 %v105
    %v119 = vunpack.c.l.b16 %v106
    %v120 = vpack.c.b16 %v117, %v116
    %v121 = vpack.c.b16 %v119, %v118
    %vm124 = vcmask 261120
    %v126 = vsel %vm124, %v108, 0
    %128 = vmatpush.bf16.msra.mxu0 0
    %129 = vmatpush.bf16.msra.mxu0 0
    %130 = vmatpush.bf16.msra.mxu0 0
    %131 = vmatpush.bf16.msra.mxu0 0
    %132 = vmatpush.bf16.msra.mxu0 0
    %133 = vmatpush.bf16.msra.mxu0 0
    %134 = vmatpush.bf16.msra.mxu0 %v121
    %135 = vmatpush.bf16.msra.mxu0 %v120
    %136 = vmatmul.bf16.gmra.mxu0 %v126
    %v137 = vpop.f32.mrf.mxu0
    %v138 = vadd.f32 %v110, %v137
    %v139 = vpop.f32.mrf.mxu0
    %140 = vdwg.mxu0
    %v141 = vmax.f32 %v138, 0.0
    %v142 = vld [vmem:[#allocation7] sm:$0xf]
    %v143 = vld [vmem:[#allocation7 + $0x4] sm:$0xf]
    %v144 = vld [vmem:[#allocation7 + $0x8] sm:$0xf]
    %v145 = vld [vmem:[#allocation7 + $0xc] sm:$0xf]
    %v146 = vld [vmem:[#allocation7 + $0x10] sm:$0xf]
    %v147 = vld [vmem:[#allocation7 + $0x14] sm:$0xf]
    %v148 = vld [vmem:[#allocation7 + $0x18] sm:$0xf]
    %v149 = vld [vmem:[#allocation7 + $0x1c] sm:$0xf]
    %v150 = vld [vmem:[#allocation8] sm:$0x1]
    %v151 = vpack.c.bf16 %v141, %v141
    %v153 = vperm.slane %v150, 0
    %v163 = vunpack.c.l.b16 %v142
    %v164 = vunpack.c.l.b16 %v143
    %v165 = vunpack.c.l.b16 %v144
    %v166 = vunpack.c.l.b16 %v145
    %v167 = vunpack.c.l.b16 %v146
    %v168 = vunpack.c.l.b16 %v147
    %v169 = vunpack.c.l.b16 %v148
    %v170 = vunpack.c.l.b16 %v149
    %v171 = vpack.c.b16 %v164, %v163
    %v172 = vpack.c.b16 %v166, %v165
    %v173 = vpack.c.b16 %v168, %v167
    %v174 = vpack.c.b16 %v170, %v169
    %vm179 = vcmask 523264
    %v181 = vsel %vm179, %v151, 0
    %183 = vmatpush.bf16.msra.mxu0 0
    %184 = vmatpush.bf16.msra.mxu0 0
    %185 = vmatpush.bf16.msra.mxu0 0
    %186 = vmatpush.bf16.msra.mxu0 0
    %187 = vmatpush.bf16.msra.mxu0 %v174
    %188 = vmatpush.bf16.msra.mxu0 %v173
    %189 = vmatpush.bf16.msra.mxu0 %v172
    %190 = vmatpush.bf16.msra.mxu0 %v171
    %191 = vmatmul.bf16.gmra.mxu0 %v181
    %v192 = vpop.f32.mrf.mxu0
    %v193 = vadd.f32 %v153, %v192
    %v194 = vpop.f32.mrf.mxu0
    %195 = vdwg.mxu0
    %v196 = vmax.f32 %v193, 0.0
    %v197 = vld [vmem:[#allocation10] sm:$0xff]
    %v198 = vld [vmem:[#allocation10 + $0x8] sm:$0xff]
    %v199 = vld [vmem:[#allocation10 + $0x10] sm:$0xff]
    %v200 = vld [vmem:[#allocation10 + $0x18] sm:$0xff]
    %v201 = vld [vmem:[#allocation10 + $0x20] sm:$0xff]
    %v202 = vld [vmem:[#allocation10 + $0x28] sm:$0xff]
    %v203 = vld [vmem:[#allocation10 + $0x30] sm:$0xff]
    %v204 = vld [vmem:[#allocation10 + $0x38] sm:$0xff]
    %v205 = vld [vmem:[#allocation10 + $0x40] sm:$0xff]
    %v206 = vld [vmem:[#allocation10 + $0x48] sm:$0xff]
    %v207 = vld [vmem:[#allocation10 + $0x50] sm:$0xff]
    %v208 = vld [vmem:[#allocation10 + $0x58] sm:$0xff]
    %v209 = vld [vmem:[#allocation10 + $0x60] sm:$0xff]
    %v210 = vld [vmem:[#allocation10 + $0x68] sm:$0xff]
    %v211 = vld [vmem:[#allocation10 + $0x70] sm:$0xff]
    %v212 = vld [vmem:[#allocation10 + $0x78] sm:$0xff]
    %v213 = vld [vmem:[%s6] sm:$0x3]
    %v214 = vpack.c.bf16 %v196, %v196
    %v216 = vperm.slane %v213, 0
    %v217 = vperm.slane %v213, 1
    %v236 = vunpack.c.l.b16 %v197
    %v237 = vunpack.c.h.b16 %v197
    %v238 = vunpack.c.l.b16 %v198
    %v239 = vunpack.c.h.b16 %v198
    %v240 = vunpack.c.l.b16 %v199
    %v241 = vunpack.c.h.b16 %v199
    %v242 = vunpack.c.l.b16 %v200
    %v243 = vunpack.c.h.b16 %v200
    %v244 = vunpack.c.l.b16 %v201
    %v245 = vunpack.c.h.b16 %v201
    %v246 = vunpack.c.l.b16 %v202
    %v247 = vunpack.c.h.b16 %v202
    %v248 = vunpack.c.l.b16 %v203
    %v249 = vunpack.c.h.b16 %v203
    %v250 = vunpack.c.l.b16 %v204
    %v251 = vunpack.c.h.b16 %v204
    %v252 = vunpack.c.l.b16 %v205
    %v253 = vunpack.c.h.b16 %v205
    %v254 = vunpack.c.l.b16 %v206
    %v255 = vunpack.c.h.b16 %v206
    %v256 = vunpack.c.l.b16 %v207
    %v257 = vunpack.c.h.b16 %v207
    %v258 = vunpack.c.l.b16 %v208
    %v259 = vunpack.c.h.b16 %v208
    %v260 = vunpack.c.l.b16 %v209
    %v261 = vunpack.c.h.b16 %v209
    %v262 = vunpack.c.l.b16 %v210
    %v263 = vunpack.c.h.b16 %v210
    %v264 = vunpack.c.l.b16 %v211
    %v265 = vunpack.c.h.b16 %v211
    %v266 = vunpack.c.l.b16 %v212
    %v267 = vunpack.c.h.b16 %v212
    %v268 = vpack.c.b16 %v238, %v236
    %v269 = vpack.c.b16 %v239, %v237
    %v270 = vpack.c.b16 %v242, %v240
    %v271 = vpack.c.b16 %v243, %v241
    %v272 = vpack.c.b16 %v246, %v244
    %v273 = vpack.c.b16 %v247, %v245
    %v274 = vpack.c.b16 %v250, %v248
    %v275 = vpack.c.b16 %v251, %v249
    %v276 = vpack.c.b16 %v254, %v252
    %v277 = vpack.c.b16 %v255, %v253
    %v278 = vpack.c.b16 %v258, %v256
    %v279 = vpack.c.b16 %v259, %v257
    %v280 = vpack.c.b16 %v262, %v260
    %v281 = vpack.c.b16 %v263, %v261
    %v282 = vpack.c.b16 %v266, %v264
    %v283 = vpack.c.b16 %v267, %v265
    %300 = vmatpush.bf16.msra.mxu0 %v282
    %301 = vmatpush.bf16.msra.mxu0 %v280
    %302 = vmatpush.bf16.msra.mxu0 %v278
    %303 = vmatpush.bf16.msra.mxu0 %v276
    %304 = vmatpush.bf16.msra.mxu0 %v274
    %305 = vmatpush.bf16.msra.mxu0 %v272
    %306 = vmatpush.bf16.msra.mxu0 %v270
    %307 = vmatpush.bf16.msra.mxu0 %v268
    %308 = vmatmul.bf16.gmra.mxu0 %v214
    %v309 = vpop.f32.mrf.mxu0
    %v310 = vadd.f32 %v216, %v309
    %v311 = vpop.f32.mrf.mxu0
    %312 = vdwg.mxu0
    %313 = vmatpush.bf16.msra.mxu0 %v283
    %314 = vmatpush.bf16.msra.mxu0 %v281
    %315 = vmatpush.bf16.msra.mxu0 %v279
    %316 = vmatpush.bf16.msra.mxu0 %v277
    %317 = vmatpush.bf16.msra.mxu0 %v275
    %318 = vmatpush.bf16.msra.mxu0 %v273
    %319 = vmatpush.bf16.msra.mxu0 %v271
    %320 = vmatpush.bf16.msra.mxu0 %v269
    %321 = vmatmul.bf16.gmra.mxu0 %v214
    %v322 = vpop.f32.mrf.mxu0
    %v323 = vadd.f32 %v217, %v322
    %v324 = vpop.f32.mrf.mxu0
    %325 = vdwg.mxu0
    %v326 = vmul.f32 %v310, %v310
    %v327 = vmul.f32 %v323, %v323
    %v328 = vadd.f32 %v326, %v327
    %329 = vadd.xlane.f32.xlu0 %v328
    %v330 = vpop.xlane.xlu0 %329
    %v331 = vmax.f32 %v330, 1e-24
    %v332 = vrsqrt.pop %v331
    %v333 = vmul.f32 %v332, %v331
    %v334 = vmul.f32 %v333, %v332
    %v335 = vmul.f32 0.5, %v334
    %v336 = vsub.f32 1.5, %v335
    %v337 = vmul.f32 %v332, %v336
    %vm338 = vweird.f32 %v331
    %vm339 = vweird.f32 %v332
    %vm340 = vmor %vm338, %vm339
    %v341 = vsel %vm340, %v332, %v337
    %v342 = vmul.f32 %v310, %v341
    %v343 = vmul.f32 %v323, %v341
    %344 = vst [vmem:[#allocation11] sm:$0xff] %v342
    %345 = vst [vmem:[#allocation11 + $0x8] sm:$0xff] %v343
    // Predicated region
    $region50: #{projection_head_forward.1} parent=1 // pred_check
      _
    $region51: #{projection_head_forward.1} parent=1 // pred_check_branch
      %347 = sbr.rel (0) target = $region53
    $region52: #{projection_head_forward.1} parent=1 // pred_region
      %349 = vsyncadd [#allocation4], 0
      %s351 = sshll.u32 [#allocation11], 4
      %s352 = int_to_ptr.vmem [resolvable:$true] %s351
      %s353 = sshll.u32 %s7, 4
      %s354 = int_to_ptr.hbm [resolvable:$true] %s353
      %356 = dma.vmem_to_hbm [thread:$0]  %s352, 256, %s354, [#allocation4]
    $region53: #{projection_head_forward.1} parent=1 // pred_fallthru
      _
    // Predicated region
    $region54: #{projection_head_forward.1} parent=1 // pred_check
      _
    $region55: #{projection_head_forward.1} parent=1 // pred_check_branch
      %358 = sbr.rel (0) target = $region57
    $region56: #{projection_head_forward.1} parent=1 // pred_region
      %360 = dma.done [#allocation4], 256
    $region57: #{projection_head_forward.1} parent=1 // pred_fallthru
      _
    %361 = vsyncpa [#allocation3], 1
    %362 = vsyncpa [#allocation6], 1
    %363 = vsyncpa [#allocation9], 1
    %364 = vsyncpa [#allocation4], 1

</llo_original>
